<compile_context>
chip_gen: v7x
topology: tpu7x:2x2x1
jax: 0.10.0
libtpu: 0.0.40
codegen_flags: <defaults>
</compile_context>

<pallas_src>
import functools
import itertools

import jax
import jax.numpy as jnp
from jax import lax
from jax.experimental import pallas as pl
from jax.experimental.pallas import tpu as pltpu

CP = 8            # contraction width: [x, y, z, 1|norm, norm|1, 0, 0, 0]
PAD_BIG = 1e7     # cost placed in padded rows/cols fed to the solver
MASK_BIG = 1e30   # "infinity" used inside the solver


def _round_up(x, m):
    return ((x + m - 1) // m) * m


# --------------------------------------------------------------------------
# Pallas kernel 1: pairwise Euclidean distance matrix (cdist)
# --------------------------------------------------------------------------
def _cdist_kernel(a_ref, b_ref, out_ref):
    # a_ref: (TM, 8) rows  [x, y, z, 1, |a|^2, 0, 0, 0]
    # b_ref: (8, MP) K-major: rows [-2x; -2y; -2z; |b|^2; 1; 0; 0; 0]
    # -> d2[i, j] = |a_i|^2 + |b_j|^2 - 2 a_i . b_j
    d2 = lax.dot_general(a_ref[...], b_ref[...],
                         (((1,), (0,)), ((), ())),
                         precision=lax.Precision.HIGHEST,
                         preferred_element_type=jnp.float32)
    out_ref[...] = jnp.sqrt(jnp.maximum(d2, 0.0))


def _pallas_cdist(a, b):
    """a: (N, 3), b: (M, 3) -> (N, M) Euclidean distance matrix (float32)."""
    n, m = a.shape[0], b.shape[0]
    a = a.astype(jnp.float32)
    b = b.astype(jnp.float32)

    # One-shot augmentation in the wrapper (kernel is just dot + clamp + sqrt).
    an = jnp.sum(a * a, axis=1, keepdims=True)                       # (N, 1)
    bn = jnp.sum(b * b, axis=1, keepdims=True)                       # (M, 1)
    a_aug = jnp.concatenate(
        [a, jnp.ones((n, 1), jnp.float32), an,
         jnp.zeros((n, CP - 5), jnp.float32)], axis=1)               # (N, 8)
    b_aug = jnp.concatenate(
        [-2.0 * b, bn, jnp.ones((m, 1), jnp.float32),
         jnp.zeros((m, CP - 5), jnp.float32)], axis=1).T             # (8, M)

    # Row tiling: single-shot when small; 512-row tiles otherwise (grid of 2
    # for the 1000-pt case -> both v7x TensorCores via "parallel").
    row_tile = _round_up(n, 8) if n <= 512 else 512
    np_ = _round_up(n, row_tile)
    mp_ = _round_up(m, 128)                                          # lane-dense

    a_p = jnp.pad(a_aug, ((0, np_ - n), (0, 0)))
    b_p = jnp.pad(b_aug, ((0, 0), (0, mp_ - m)))

    d = pl.pallas_call(
        _cdist_kernel,
        out_shape=jax.ShapeDtypeStruct((np_, mp_), jnp.float32),
        grid_spec=pltpu.PrefetchScalarGridSpec(
            num_scalar_prefetch=0,
            grid=(np_ // row_tile,),
            in_specs=[
                pl.BlockSpec((row_tile, CP), lambda i: (i, 0)),
                pl.BlockSpec((CP, mp_), lambda i: (0, 0)),
            ],
            out_specs=pl.BlockSpec((row_tile, mp_), lambda i: (i, 0)),
        ),
        compiler_params=pltpu.CompilerParams(
            dimension_semantics=("parallel",)),
    )(a_p, b_p)
    return d[:n, :m]


# --------------------------------------------------------------------------
# Pallas kernel 2: exact linear_sum_assignment (Jonker-Volgenant)
# --------------------------------------------------------------------------
def _lsa_kernel(n, cost_ref, asg_ref,
                u_ref, v_ref, minv_ref, way_ref, used_ref, rowu_ref,
                p_ref, j0_ref):
    """Shortest-augmenting-path assignment with the cost matrix VMEM-resident.

    cost_ref : (NR, NC) f32; entries outside the real n x n block are PAD_BIG.
    asg_ref  : (1, NC) i32 output; asg[0, j] = row matched to column j (j < n).
    u/v/minv : (1, NC) f32 VMEM; way/used/rowu : (1, NC) i32 VMEM.
    p_ref    : (NC + 8,) i32 SMEM col->row matching (virtual column index = n).
    j0_ref   : (1,) i32 SMEM current column of the Dijkstra / augmentation.
    """
    nc = cost_ref.shape[1]
    col_iota = lax.broadcasted_iota(jnp.int32, (1, nc), 1)

    u_ref[...] = jnp.zeros((1, nc), jnp.float32)
    v_ref[...] = jnp.zeros((1, nc), jnp.float32)
    asg_ref[...] = jnp.full((1, nc), -1, jnp.int32)

    def init_p(j, c):
        p_ref[j] = -1
        return c
    lax.fori_loop(0, nc + 8, init_p, 0)

    def assign_row(i, carry):
        p_ref[n] = i                    # virtual column n holds the new row
        j0_ref[0] = n
        minv_ref[...] = jnp.full((1, nc), MASK_BIG, jnp.float32)
        way_ref[...] = jnp.full((1, nc), n, jnp.int32)
        used_ref[...] = jnp.zeros((1, nc), jnp.int32)
        rowu_ref[...] = jnp.zeros((1, nc), jnp.int32)

        # --- Dijkstra over columns: at most i+1 productive iterations; the
        #     remaining iterations of the static-bound loop are no-ops.
        def dij_step(t, c):
            j0 = j0_ref[0]

            @pl.when(p_ref[j0] != -1)
            def _():
                used_ref[...] = jnp.where(col_iota == j0, 1, used_ref[...])
                i0 = p_ref[j0]
                rowu_ref[...] = jnp.where(col_iota == i0, 1, rowu_ref[...])
                used_m = used_ref[...] != 0
                u_i0 = jnp.sum(jnp.where(col_iota == i0, u_ref[...], 0.0))
                cost_row = cost_ref[pl.ds(i0, 1), :]                 # (1, NC)
                cur = jnp.where(used_m, MASK_BIG,
                                cost_row - u_i0 - v_ref[...])
                better = cur < minv_ref[...]
                minv_new = jnp.where(better, cur, minv_ref[...])
                way_ref[...] = jnp.where(better, j0, way_ref[...])
                masked = jnp.where(used_m, MASK_BIG, minv_new)
                delta = jnp.min(masked)
                j1 = jnp.min(jnp.where(masked == delta, col_iota, nc))
                # Dual update: row-used mask instead of a scatter-add.
                u_ref[...] = jnp.where(rowu_ref[...] != 0,
                                       u_ref[...] + delta, u_ref[...])
                v_ref[...] = jnp.where(used_m, v_ref[...] - delta, v_ref[...])
                minv_ref[...] = jnp.where(used_m, minv_new, minv_new - delta)
                j0_ref[0] = j1
            return c
        lax.fori_loop(0, n + 1, dij_step, 0)

        # --- Augment along the way[] chain back to the virtual column.
        def aug_step(t, c):
            j0 = j0_ref[0]

            @pl.when(j0 != n)
            def _():
                j1 = jnp.sum(jnp.where(col_iota == j0, way_ref[...], 0))
                p_ref[j0] = p_ref[j1]
                j0_ref[0] = j1
            return c
        lax.fori_loop(0, n + 1, aug_step, 0)
        return carry
    lax.fori_loop(0, n, assign_row, 0)

    # Emit the matching as a lane-dense int32 row.
    def write_col(j, c):
        asg_ref[...] = jnp.where(col_iota == j, p_ref[j], asg_ref[...])
        return c
    lax.fori_loop(0, n, write_col, 0)


def _linear_sum_assignment(cost):
    """Square cost (n, n) -> row_of_col[j]: row matched to column j (optimal)."""
    n = cost.shape[0]
    assert cost.shape[0] == cost.shape[1]
    nr = _round_up(n, 8)
    nc = _round_up(n, 128)
    cost_p = jnp.pad(cost.astype(jnp.float32),
                     ((0, nr - n), (0, nc - n)), constant_values=PAD_BIG)
    asg = pl.pallas_call(
        functools.partial(_lsa_kernel, n),
        out_shape=jax.ShapeDtypeStruct((1, nc), jnp.int32),
        grid_spec=pltpu.PrefetchScalarGridSpec(
            num_scalar_prefetch=0,
            grid=(1,),
            in_specs=[pl.BlockSpec((nr, nc), lambda i: (0, 0))],
            out_specs=pl.BlockSpec((1, nc), lambda i: (0, 0)),
            scratch_shapes=[
                pltpu.VMEM((1, nc), jnp.float32),   # u (row potentials)
                pltpu.VMEM((1, nc), jnp.float32),   # v (col potentials)
                pltpu.VMEM((1, nc), jnp.float32),   # minv
                pltpu.VMEM((1, nc), jnp.int32),     # way
                pltpu.VMEM((1, nc), jnp.int32),     # used columns
                pltpu.VMEM((1, nc), jnp.int32),     # used rows (tree)
                pltpu.SMEM((nc + 8,), jnp.int32),   # p: col -> row (+ virtual)
                pltpu.SMEM((1,), jnp.int32),        # j0
            ]),
        compiler_params=pltpu.CompilerParams(
            dimension_semantics=("arbitrary",)),
    )(cost_p)
    return asg[0, :n]


# --------------------------------------------------------------------------
# Forward pass (matches EarthMoversDistance.forward)
# --------------------------------------------------------------------------
def earth_movers_distance(registration_pred, registration_gt, coords):
    coords = jnp.reshape(coords, (-1, 3)).astype(jnp.float32)
    gt_pc = coords + jnp.reshape(registration_gt, (-1, 3)).astype(jnp.float32)
    gen_pc = coords + jnp.reshape(registration_pred, (-1, 3)).astype(jnp.float32)
    # TODO(synk): scipy's linear_sum_assignment also accepts rectangular costs;
    # here both clouds are truncated to a common size k (square problem).
    k = min(1000, gt_pc.shape[0], gen_pc.shape[0])     # reference: [:1000]
    gt_pc = gt_pc[:k]
    gen_pc = gen_pc[:k]
    d = _pallas_cdist(gt_pc, gen_pc)                   # (k, k) L2 distances
    row_of_col = _linear_sum_assignment(d)             # optimal matching
    return jnp.mean(d[row_of_col, jnp.arange(k)])      # d[assignment].mean()


if __name__ == "__main__":
    key = jax.random.PRNGKey(0)
    k1, k2, k3 = jax.random.split(key, 3)
    N = 128
    coords = jax.random.normal(k1, (N, 3), jnp.float32)
    registration_gt = 0.1 * jax.random.normal(k2, (1, N, 3), jnp.float32)
    registration_pred = 0.1 * jax.random.normal(k3, (1, N, 3), jnp.float32)

    # --- self-check 1: Pallas cdist vs plain-JAX cdist ---
    gt_pc = coords + registration_gt.reshape(N, 3)
    gen_pc = coords + registration_pred.reshape(N, 3)
    d = _pallas_cdist(gt_pc, gen_pc)
    d_ref = jnp.sqrt(jnp.maximum(
        jnp.sum((gt_pc[:, None, :] - gen_pc[None, :, :]) ** 2, axis=-1), 0.0))
    assert jnp.allclose(d, d_ref, atol=2e-3, rtol=2e-3), \
        float(jnp.max(jnp.abs(d - d_ref)))

    # --- self-check 2: Pallas assignment solver vs brute force (5x5) ---
    small = jax.random.uniform(jax.random.PRNGKey(1), (5, 5), jnp.float32)
    row_of_col = _linear_sum_assignment(small)
    assert sorted(int(r) for r in row_of_col) == list(range(5))
    val = float(jnp.sum(small[row_of_col, jnp.arange(5)]))
    best = min(sum(float(small[i, perm[i]]) for i in range(5))
               for perm in itertools.permutations(range(5)))
    assert abs(val - best) < 1e-4, (val, best)

    # --- full forward ---
    emd = jax.jit(earth_movers_distance)(registration_pred, registration_gt,
                                         coords)
    emd = jax.block_until_ready(emd)
    assert emd.shape == () and bool(jnp.isfinite(emd))
    print("KERNEL_OK")
</pallas_src>

<mosaic_0001>
module attributes {stable_mosaic.version = 11 : i64} {
  func.func @_cdist_kernel(%arg0: i32, %arg1: memref<128x8xf32, #tpu.memory_space<vmem>>, %arg2: memref<8x128xf32, #tpu.memory_space<vmem>>, %arg3: memref<128x128xf32, #tpu.memory_space<vmem>>) attributes {dimension_semantics = [#tpu.dimension_semantics<parallel>], iteration_bounds = array<i64: 1>, scalar_prefetch = 0 : i64, scratch_operands = 0 : i64, tpu.core_type = #tpu.core_type<tc>, window_params = [{transform_indices = @transform_0, window_bounds = array<i64: 128, 8>}, {pipeline_mode = #tpu.pipeline_mode<synchronous>, transform_indices = @transform_1, window_bounds = array<i64: 8, 128>}, {transform_indices = @transform_2, window_bounds = array<i64: 128, 128>}]} {
    %c0 = arith.constant 0 : index
    %c0_0 = arith.constant 0 : index
    %0 = vector.load %arg1[%c0, %c0_0] : memref<128x8xf32, #tpu.memory_space<vmem>>, vector<128x8xf32>
    %c0_1 = arith.constant 0 : index
    %c0_2 = arith.constant 0 : index
    %1 = vector.load %arg2[%c0_1, %c0_2] : memref<8x128xf32, #tpu.memory_space<vmem>>, vector<8x128xf32>
    %cst = arith.constant dense<0.000000e+00> : vector<128x128xf32>
    %2 = tpu.matmul %0, %1, %cst {dimension_numbers = #tpu.dot_dimension_numbers<[1], [0], [0], [1], [0, 0, 1, 1], [], []>, precision = #tpu.contract_precision<fp32>} : vector<128x8xf32>, vector<8x128xf32>, vector<128x128xf32> -> vector<128x128xf32>
    %cst_3 = arith.constant 0.000000e+00 : f32
    %3 = vector.broadcast %cst_3 : f32 to vector<128x128xf32>
    %4 = arith.maximumf %2, %3 : vector<128x128xf32>
    %5 = math.sqrt %4 : vector<128x128xf32>
    %c0_4 = arith.constant 0 : index
    %c0_5 = arith.constant 0 : index
    %6 = vector.load %arg3[%c0_4, %c0_5] : memref<128x128xf32, #tpu.memory_space<vmem>>, vector<128x128xf32>
    tpu.vector_store %arg3[%c0_4, %c0_5], %5 {strides = array<i32>} : memref<128x128xf32, #tpu.memory_space<vmem>>, vector<128x128xf32>,
    return
  }
  func.func @transform_0(%arg0: i32) -> (i32, i32) {
    %c0_i32 = arith.constant 0 : i32
    %c0_i32_0 = arith.constant 0 : i32
    return %arg0, %c0_i32 : i32, i32
  }
  func.func @transform_1(%arg0: i32) -> (i32, i32) {
    %c0_i32 = arith.constant 0 : i32
    %c0_i32_0 = arith.constant 0 : i32
    %c0_i32_1 = arith.constant 0 : i32
    return %c0_i32, %c0_i32_0 : i32, i32
  }
  func.func @transform_2(%arg0: i32) -> (i32, i32) {
    %c0_i32 = arith.constant 0 : i32
    %c0_i32_0 = arith.constant 0 : i32
    return %arg0, %c0_i32 : i32, i32
  }
}

</mosaic_0001>

<llo_original>
// kernel: tpu_custom_call.1
$region0: #{tpu_custom_call.1}
  #allocation0 [shape = 'u32[]', space=smem, size = 0x4, offset = 0x4, fixed_abs, tag = 'smem constant byte address 0x4 - core index']
  #allocation1 [shape = 'u32[144,128]{1,0:T(1,128)}', space=vmem, size = 0x12000, scoped, tag = 'internal scratch']
  %s0 = inlined_call_operand.vmem [shape: f32[128,8], index: 0, kind: input, shape index: {}]
  %s1 = inlined_call_operand.vmem [shape: f32[8,128], index: 1, kind: input, shape index: {}]
  %s2 = inlined_call_operand.hbm [shape: f32[128,128], index: 2, kind: output, shape index: {}]
  %s3 = sld [smem:[#allocation0]]
  $region18: #{tpu_custom_call.1} parent=0
    _
  %s5 = ssub.s32 1, %s3
  %s6 = scalar_select 0, %s5, %s3
  $region1: #{tpu_custom_call.1} parent=0
    #allocation2 [shape = 'u8[65536]{0}', space=vmem, size = 0x10000, scoped, tag = 'output window, operand 0, single buffered']
    #allocation3 [shape = 's32[1]{0}', space=sflag, size = 0x4, scoped, tag = 'scoped memory for tpu_custom_call.1']
    %7 = vsyncpa [#allocation3], 0
    // Predicated region
    $region2: #{tpu_custom_call.1} parent=1 // pred_check
      _
    $region3: #{tpu_custom_call.1} parent=1 // pred_check_branch
      %9 = sbr.rel (0) target = $region5
    $region4: #{tpu_custom_call.1} parent=1 // pred_region
      _
    $region5: #{tpu_custom_call.1} parent=1 // pred_fallthru
      _
    // Predicated region
    $region6: #{tpu_custom_call.1} parent=1 // pred_check
      _
    $region7: #{tpu_custom_call.1} parent=1 // pred_check_branch
      %11 = sbr.rel (0) target = $region9
    $region8: #{tpu_custom_call.1} parent=1 // pred_region
      _
    $region9: #{tpu_custom_call.1} parent=1 // pred_fallthru
      _
    %v12 = vld [vmem:[%s0] sm:$0xff]
    %v13 = vld [vmem:[%s0 + $0x8] sm:$0xff]
    %v14 = vld [vmem:[%s0 + $0x10] sm:$0xff]
    %v15 = vld [vmem:[%s0 + $0x18] sm:$0xff]
    %v16 = vld [vmem:[%s0 + $0x20] sm:$0xff]
    %v17 = vld [vmem:[%s0 + $0x28] sm:$0xff]
    %v18 = vld [vmem:[%s0 + $0x30] sm:$0xff]
    %v19 = vld [vmem:[%s0 + $0x38] sm:$0xff]
    %v20 = vld [vmem:[%s0 + $0x40] sm:$0xff]
    %v21 = vld [vmem:[%s0 + $0x48] sm:$0xff]
    %v22 = vld [vmem:[%s0 + $0x50] sm:$0xff]
    %v23 = vld [vmem:[%s0 + $0x58] sm:$0xff]
    %v24 = vld [vmem:[%s0 + $0x60] sm:$0xff]
    %v25 = vld [vmem:[%s0 + $0x68] sm:$0xff]
    %v26 = vld [vmem:[%s0 + $0x70] sm:$0xff]
    %v27 = vld [vmem:[%s0 + $0x78] sm:$0xff]
    %v28 = vld [vmem:[%s1] sm:$0xff]
    %vm29 = vcmask 64512
    %v31 = vsel %vm29, %v12, 0
    %v34 = vsel %vm29, %v13, 0
    %v37 = vsel %vm29, %v14, 0
    %v40 = vsel %vm29, %v15, 0
    %v43 = vsel %vm29, %v16, 0
    %v46 = vsel %vm29, %v17, 0
    %v49 = vsel %vm29, %v18, 0
    %v52 = vsel %vm29, %v19, 0
    %v55 = vsel %vm29, %v20, 0
    %v58 = vsel %vm29, %v21, 0
    %v61 = vsel %vm29, %v22, 0
    %v64 = vsel %vm29, %v23, 0
    %v67 = vsel %vm29, %v24, 0
    %v70 = vsel %vm29, %v25, 0
    %v73 = vsel %vm29, %v26, 0
    %v76 = vsel %vm29, %v27, 0
    %78 = vmatprep.subr.mxu0 0.0
    %v79 = vand.u32 %v28, 4294901760
    %80 = vmatpush1.msra.mxu0 %v79
    %81 = vmatprep.subr.mxu0 0.0
    %82 = vmatpush1.msra.mxu0 0.0
    %83 = vmatprep.subr.mxu0 0.0
    %84 = vmatpush1.msra.mxu0 0.0
    %85 = vmatprep.subr.mxu0 0.0
    %86 = vmatpush1.msra.mxu0 0.0
    %87 = vmatprep.subr.mxu0 0.0
    %88 = vmatpush1.msra.mxu0 0.0
    %89 = vmatprep.subr.mxu0 0.0
    %90 = vmatpush1.msra.mxu0 0.0
    %91 = vmatprep.subr.mxu0 0.0
    %92 = vmatpush1.msra.mxu0 0.0
    %93 = vmatprep.subr.mxu0 0.0
    %94 = vmatpush1.msra.mxu0 0.0
    %95 = vmatprep.subr.mxu0 0.0
    %96 = vmatpush1.msra.mxu0 0.0
    %97 = vmatprep.subr.mxu0 0.0
    %98 = vmatpush1.msra.mxu0 0.0
    %99 = vmatprep.subr.mxu0 0.0
    %100 = vmatpush1.msra.mxu0 0.0
    %101 = vmatprep.subr.mxu0 0.0
    %102 = vmatpush1.msra.mxu0 0.0
    %103 = vmatprep.subr.mxu0 0.0
    %104 = vmatpush1.msra.mxu0 0.0
    %105 = vmatprep.subr.mxu0 0.0
    %106 = vmatpush1.msra.mxu0 0.0
    %107 = vmatprep.subr.mxu0 0.0
    %108 = vmatpush1.msra.mxu0 0.0
    %109 = vmatprep.subr.mxu0 0.0
    %110 = vmatpush1.msra.mxu0 0.0
    %111 = vmatprep.subr.mxu0 0.0
    %112 = vmatpush1.msra.mxu0 0.0
    %113 = vmatprep.subr.mxu0 0.0
    %114 = vmatpush1.msra.mxu0 0.0
    %115 = vmatprep.subr.mxu0 0.0
    %116 = vmatpush1.msra.mxu0 0.0
    %117 = vmatprep.subr.mxu0 0.0
    %118 = vmatpush1.msra.mxu0 0.0
    %119 = vmatprep.subr.mxu0 0.0
    %120 = vmatpush1.msra.mxu0 0.0
    %121 = vmatprep.subr.mxu0 0.0
    %122 = vmatpush1.msra.mxu0 0.0
    %123 = vmatprep.subr.mxu0 0.0
    %124 = vmatpush1.msra.mxu0 0.0
    %125 = vmatprep.subr.mxu0 0.0
    %126 = vmatpush1.msra.mxu0 0.0
    %127 = vmatprep.subr.mxu0 0.0
    %128 = vmatpush1.msra.mxu0 0.0
    %129 = vmatprep.subr.mxu0 0.0
    %130 = vmatpush1.msra.mxu0 0.0
    %131 = vmatprep.subr.mxu0 0.0
    %132 = vmatpush1.msra.mxu0 0.0
    %133 = vmatprep.subr.mxu0 0.0
    %134 = vmatpush1.msra.mxu0 0.0
    %135 = vmatprep.subr.mxu0 0.0
    %136 = vmatpush1.msra.mxu0 0.0
    %137 = vmatprep.subr.mxu0 0.0
    %138 = vmatpush1.msra.mxu0 0.0
    %139 = vmatprep.subr.mxu0 0.0
    %140 = vmatpush1.msra.mxu0 0.0
    %141 = vmatprep.subr.mxu0 0.0
    %142 = vmatpush1.msra.mxu0 0.0
    %143 = vmatprep.mubr.f32.mxu0 0.0
    %v144 = vand.u32 %v31, 4294901760
    %v145 = vsub.f32 %v31, %v144
    %v146 = vand.u32 %v145, 4294901760
    %v147 = vsub.f32 %v145, %v146
    %v148 = vand.u32 %v147, 4294901760
    %149 = vmatmul.mubr.f32.gmra.mrb[0].mxu0 %v148
    %v150 = vpop.f32.mrb[0].mxu0
    %v151 = vadd.f32 0.0, %v150
    %v152 = vpop.f32.mrb[0].mxu0
    %153 = vmatprep.mubr.f32.mxu0 0.0
    %v154 = vand.u32 %v34, 4294901760
    %v155 = vsub.f32 %v34, %v154
    %v156 = vand.u32 %v155, 4294901760
    %v157 = vsub.f32 %v155, %v156
    %v158 = vand.u32 %v157, 4294901760
    %159 = vmatmul.mubr.f32.gmra.mrb[0].mxu0 %v158
    %v160 = vpop.f32.mrb[0].mxu0
    %v161 = vadd.f32 0.0, %v160
    %v162 = vpop.f32.mrb[0].mxu0
    %163 = vmatprep.mubr.f32.mxu0 0.0
    %v164 = vand.u32 %v37, 4294901760
    %v165 = vsub.f32 %v37, %v164
    %v166 = vand.u32 %v165, 4294901760
    %v167 = vsub.f32 %v165, %v166
    %v168 = vand.u32 %v167, 4294901760
    %169 = vmatmul.mubr.f32.gmra.mrb[0].mxu0 %v168
    %v170 = vpop.f32.mrb[0].mxu0
    %v171 = vadd.f32 0.0, %v170
    %v172 = vpop.f32.mrb[0].mxu0
    %173 = vmatprep.mubr.f32.mxu0 0.0
    %v174 = vand.u32 %v40, 4294901760
    %v175 = vsub.f32 %v40, %v174
    %v176 = vand.u32 %v175, 4294901760
    %v177 = vsub.f32 %v175, %v176
    %v178 = vand.u32 %v177, 4294901760
    %179 = vmatmul.mubr.f32.gmra.mrb[0].mxu0 %v178
    %v180 = vpop.f32.mrb[0].mxu0
    %v181 = vadd.f32 0.0, %v180
    %v182 = vpop.f32.mrb[0].mxu0
    %183 = vmatprep.mubr.f32.mxu0 0.0
    %v184 = vand.u32 %v43, 4294901760
    %v185 = vsub.f32 %v43, %v184
    %v186 = vand.u32 %v185, 4294901760
    %v187 = vsub.f32 %v185, %v186
    %v188 = vand.u32 %v187, 4294901760
    %189 = vmatmul.mubr.f32.gmra.mrb[0].mxu0 %v188
    %v190 = vpop.f32.mrb[0].mxu0
    %v191 = vadd.f32 0.0, %v190
    %v192 = vpop.f32.mrb[0].mxu0
    %193 = vmatprep.mubr.f32.mxu0 0.0
    %v194 = vand.u32 %v46, 4294901760
    %v195 = vsub.f32 %v46, %v194
    %v196 = vand.u32 %v195, 4294901760
    %v197 = vsub.f32 %v195, %v196
    %v198 = vand.u32 %v197, 4294901760
    %199 = vmatmul.mubr.f32.gmra.mrb[0].mxu0 %v198
    %v200 = vpop.f32.mrb[0].mxu0
    %v201 = vadd.f32 0.0, %v200
    %v202 = vpop.f32.mrb[0].mxu0
    %203 = vmatprep.mubr.f32.mxu0 0.0
    %v204 = vand.u32 %v49, 4294901760
    %v205 = vsub.f32 %v49, %v204
    %v206 = vand.u32 %v205, 4294901760
    %v207 = vsub.f32 %v205, %v206
    %v208 = vand.u32 %v207, 4294901760
    %209 = vmatmul.mubr.f32.gmra.mrb[0].mxu0 %v208
    %v210 = vpop.f32.mrb[0].mxu0
    %v211 = vadd.f32 0.0, %v210
    %v212 = vpop.f32.mrb[0].mxu0
    %213 = vmatprep.mubr.f32.mxu0 0.0
    %v214 = vand.u32 %v52, 4294901760
    %v215 = vsub.f32 %v52, %v214
    %v216 = vand.u32 %v215, 4294901760
    %v217 = vsub.f32 %v215, %v216
    %v218 = vand.u32 %v217, 4294901760
    %219 = vmatmul.mubr.f32.gmra.mrb[0].mxu0 %v218
    %v220 = vpop.f32.mrb[0].mxu0
    %v221 = vadd.f32 0.0, %v220
    %v222 = vpop.f32.mrb[0].mxu0
    %223 = vmatprep.mubr.f32.mxu0 0.0
    %v224 = vand.u32 %v55, 4294901760
    %v225 = vsub.f32 %v55, %v224
    %v226 = vand.u32 %v225, 4294901760
    %v227 = vsub.f32 %v225, %v226
    %v228 = vand.u32 %v227, 4294901760
    %229 = vmatmul.mubr.f32.gmra.mrb[0].mxu0 %v228
    %v230 = vpop.f32.mrb[0].mxu0
    %v231 = vadd.f32 0.0, %v230
    %v232 = vpop.f32.mrb[0].mxu0
    %233 = vmatprep.mubr.f32.mxu0 0.0
    %v234 = vand.u32 %v58, 4294901760
    %v235 = vsub.f32 %v58, %v234
    %v236 = vand.u32 %v235, 4294901760
    %v237 = vsub.f32 %v235, %v236
    %v238 = vand.u32 %v237, 4294901760
    %239 = vmatmul.mubr.f32.gmra.mrb[0].mxu0 %v238
    %v240 = vpop.f32.mrb[0].mxu0
    %v241 = vadd.f32 0.0, %v240
    %v242 = vpop.f32.mrb[0].mxu0
    %243 = vmatprep.mubr.f32.mxu0 0.0
    %v244 = vand.u32 %v61, 4294901760
    %v245 = vsub.f32 %v61, %v244
    %v246 = vand.u32 %v245, 4294901760
    %v247 = vsub.f32 %v245, %v246
    %v248 = vand.u32 %v247, 4294901760
    %249 = vmatmul.mubr.f32.gmra.mrb[0].mxu0 %v248
    %v250 = vpop.f32.mrb[0].mxu0
    %v251 = vadd.f32 0.0, %v250
    %v252 = vpop.f32.mrb[0].mxu0
    %253 = vmatprep.mubr.f32.mxu0 0.0
    %v254 = vand.u32 %v64, 4294901760
    %v255 = vsub.f32 %v64, %v254
    %v256 = vand.u32 %v255, 4294901760
    %v257 = vsub.f32 %v255, %v256
    %v258 = vand.u32 %v257, 4294901760
    %259 = vmatmul.mubr.f32.gmra.mrb[0].mxu0 %v258
    %v260 = vpop.f32.mrb[0].mxu0
    %v261 = vadd.f32 0.0, %v260
    %v262 = vpop.f32.mrb[0].mxu0
    %263 = vmatprep.mubr.f32.mxu0 0.0
    %v264 = vand.u32 %v67, 4294901760
    %v265 = vsub.f32 %v67, %v264
    %v266 = vand.u32 %v265, 4294901760
    %v267 = vsub.f32 %v265, %v266
    %v268 = vand.u32 %v267, 4294901760
    %269 = vmatmul.mubr.f32.gmra.mrb[0].mxu0 %v268
    %v270 = vpop.f32.mrb[0].mxu0
    %v271 = vadd.f32 0.0, %v270
    %v272 = vpop.f32.mrb[0].mxu0
    %273 = vmatprep.mubr.f32.mxu0 0.0
    %v274 = vand.u32 %v70, 4294901760
    %v275 = vsub.f32 %v70, %v274
    %v276 = vand.u32 %v275, 4294901760
    %v277 = vsub.f32 %v275, %v276
    %v278 = vand.u32 %v277, 4294901760
    %279 = vmatmul.mubr.f32.gmra.mrb[0].mxu0 %v278
    %v280 = vpop.f32.mrb[0].mxu0
    %v281 = vadd.f32 0.0, %v280
    %v282 = vpop.f32.mrb[0].mxu0
    %283 = vmatprep.mubr.f32.mxu0 0.0
    %v284 = vand.u32 %v73, 4294901760
    %v285 = vsub.f32 %v73, %v284
    %v286 = vand.u32 %v285, 4294901760
    %v287 = vsub.f32 %v285, %v286
    %v288 = vand.u32 %v287, 4294901760
    %289 = vmatmul.mubr.f32.gmra.mrb[0].mxu0 %v288
    %v290 = vpop.f32.mrb[0].mxu0
    %v291 = vadd.f32 0.0, %v290
    %v292 = vpop.f32.mrb[0].mxu0
    %293 = vmatprep.mubr.f32.mxu0 0.0
    %v294 = vand.u32 %v76, 4294901760
    %v295 = vsub.f32 %v76, %v294
    %v296 = vand.u32 %v295, 4294901760
    %v297 = vsub.f32 %v295, %v296
    %v298 = vand.u32 %v297, 4294901760
    %299 = vmatmul.mubr.f32.gmra.mrb[0].mxu0 %v298
    %v300 = vpop.f32.mrb[0].mxu0
    %v301 = vadd.f32 0.0, %v300
    %v302 = vpop.f32.mrb[0].mxu0
    %303 = vdwg.mxu0
    %304 = vmatprep.subr.mxu0 0.0
    %v305 = vand.u32 %v28, 4294901760
    %v306 = vsub.f32 %v28, %v305
    %v307 = vand.u32 %v306, 4294901760
    %v308 = vsub.f32 %v306, %v307
    %v309 = vand.u32 %v308, 4294901760
    %310 = vmatpush1.msra.mxu0 %v309
    %311 = vmatprep.subr.mxu0 0.0
    %312 = vmatpush1.msra.mxu0 0.0
    %313 = vmatprep.subr.mxu0 0.0
    %314 = vmatpush1.msra.mxu0 0.0
    %315 = vmatprep.subr.mxu0 0.0
    %316 = vmatpush1.msra.mxu0 0.0
    %317 = vmatprep.subr.mxu0 0.0
    %318 = vmatpush1.msra.mxu0 0.0
    %319 = vmatprep.subr.mxu0 0.0
    %320 = vmatpush1.msra.mxu0 0.0
    %321 = vmatprep.subr.mxu0 0.0
    %322 = vmatpush1.msra.mxu0 0.0
    %323 = vmatprep.subr.mxu0 0.0
    %324 = vmatpush1.msra.mxu0 0.0
    %325 = vmatprep.subr.mxu0 0.0
    %326 = vmatpush1.msra.mxu0 0.0
    %327 = vmatprep.subr.mxu0 0.0
    %328 = vmatpush1.msra.mxu0 0.0
    %329 = vmatprep.subr.mxu0 0.0
    %330 = vmatpush1.msra.mxu0 0.0
    %331 = vmatprep.subr.mxu0 0.0
    %332 = vmatpush1.msra.mxu0 0.0
    %333 = vmatprep.subr.mxu0 0.0
    %334 = vmatpush1.msra.mxu0 0.0
    %335 = vmatprep.subr.mxu0 0.0
    %336 = vmatpush1.msra.mxu0 0.0
    %337 = vmatprep.subr.mxu0 0.0
    %338 = vmatpush1.msra.mxu0 0.0
    %339 = vmatprep.subr.mxu0 0.0
    %340 = vmatpush1.msra.mxu0 0.0
    %341 = vmatprep.subr.mxu0 0.0
    %342 = vmatpush1.msra.mxu0 0.0
    %343 = vmatprep.subr.mxu0 0.0
    %344 = vmatpush1.msra.mxu0 0.0
    %345 = vmatprep.subr.mxu0 0.0
    %346 = vmatpush1.msra.mxu0 0.0
    %347 = vmatprep.subr.mxu0 0.0
    %348 = vmatpush1.msra.mxu0 0.0
    %349 = vmatprep.subr.mxu0 0.0
    %350 = vmatpush1.msra.mxu0 0.0
    %351 = vmatprep.subr.mxu0 0.0
    %352 = vmatpush1.msra.mxu0 0.0
    %353 = vmatprep.subr.mxu0 0.0
    %354 = vmatpush1.msra.mxu0 0.0
    %355 = vmatprep.subr.mxu0 0.0
    %356 = vmatpush1.msra.mxu0 0.0
    %357 = vmatprep.subr.mxu0 0.0
    %358 = vmatpush1.msra.mxu0 0.0
    %359 = vmatprep.subr.mxu0 0.0
    %360 = vmatpush1.msra.mxu0 0.0
    %361 = vmatprep.subr.mxu0 0.0
    %362 = vmatpush1.msra.mxu0 0.0
    %363 = vmatprep.subr.mxu0 0.0
    %364 = vmatpush1.msra.mxu0 0.0
    %365 = vmatprep.subr.mxu0 0.0
    %366 = vmatpush1.msra.mxu0 0.0
    %367 = vmatprep.subr.mxu0 0.0
    %368 = vmatpush1.msra.mxu0 0.0
    %369 = vmatprep.subr.mxu0 0.0
    %370 = vmatpush1.msra.mxu0 0.0
    %371 = vmatprep.subr.mxu0 0.0
    %372 = vmatpush1.msra.mxu0 0.0
    %373 = vmatprep.mubr.f32.mxu0 0.0
    %v374 = vand.u32 %v31, 4294901760
    %375 = vmatmul.mubr.f32.gmra.mrb[0].mxu0 %v374
    %v376 = vpop.f32.mrb[0].mxu0
    %v377 = vadd.f32 %v151, %v376
    %v378 = vpop.f32.mrb[0].mxu0
    %379 = vmatprep.mubr.f32.mxu0 0.0
    %v380 = vand.u32 %v34, 4294901760
    %381 = vmatmul.mubr.f32.gmra.mrb[0].mxu0 %v380
    %v382 = vpop.f32.mrb[0].mxu0
    %v383 = vadd.f32 %v161, %v382
    %v384 = vpop.f32.mrb[0].mxu0
    %385 = vmatprep.mubr.f32.mxu0 0.0
    %v386 = vand.u32 %v37, 4294901760
    %387 = vmatmul.mubr.f32.gmra.mrb[0].mxu0 %v386
    %v388 = vpop.f32.mrb[0].mxu0
    %v389 = vadd.f32 %v171, %v388
    %v390 = vpop.f32.mrb[0].mxu0
    %391 = vmatprep.mubr.f32.mxu0 0.0
    %v392 = vand.u32 %v40, 4294901760
    %393 = vmatmul.mubr.f32.gmra.mrb[0].mxu0 %v392
    %v394 = vpop.f32.mrb[0].mxu0
    %v395 = vadd.f32 %v181, %v394
    %v396 = vpop.f32.mrb[0].mxu0
    %397 = vmatprep.mubr.f32.mxu0 0.0
    %v398 = vand.u32 %v43, 4294901760
    %399 = vmatmul.mubr.f32.gmra.mrb[0].mxu0 %v398
    %v400 = vpop.f32.mrb[0].mxu0
    %v401 = vadd.f32 %v191, %v400
    %v402 = vpop.f32.mrb[0].mxu0
    %403 = vmatprep.mubr.f32.mxu0 0.0
    %v404 = vand.u32 %v46, 4294901760
    %405 = vmatmul.mubr.f32.gmra.mrb[0].mxu0 %v404
    %v406 = vpop.f32.mrb[0].mxu0
    %v407 = vadd.f32 %v201, %v406
    %v408 = vpop.f32.mrb[0].mxu0
    %409 = vmatprep.mubr.f32.mxu0 0.0
    %v410 = vand.u32 %v49, 4294901760
    %411 = vmatmul.mubr.f32.gmra.mrb[0].mxu0 %v410
    %v412 = vpop.f32.mrb[0].mxu0
    %v413 = vadd.f32 %v211, %v412
    %v414 = vpop.f32.mrb[0].mxu0
    %415 = vmatprep.mubr.f32.mxu0 0.0
    %v416 = vand.u32 %v52, 4294901760
    %417 = vmatmul.mubr.f32.gmra.mrb[0].mxu0 %v416
    %v418 = vpop.f32.mrb[0].mxu0
    %v419 = vadd.f32 %v221, %v418
    %v420 = vpop.f32.mrb[0].mxu0
    %421 = vmatprep.mubr.f32.mxu0 0.0
    %v422 = vand.u32 %v55, 4294901760
    %423 = vmatmul.mubr.f32.gmra.mrb[0].mxu0 %v422
    %v424 = vpop.f32.mrb[0].mxu0
    %v425 = vadd.f32 %v231, %v424
    %v426 = vpop.f32.mrb[0].mxu0
    %427 = vmatprep.mubr.f32.mxu0 0.0
    %v428 = vand.u32 %v58, 4294901760
    %429 = vmatmul.mubr.f32.gmra.mrb[0].mxu0 %v428
    %v430 = vpop.f32.mrb[0].mxu0
    %v431 = vadd.f32 %v241, %v430
    %v432 = vpop.f32.mrb[0].mxu0
    %433 = vmatprep.mubr.f32.mxu0 0.0
    %v434 = vand.u32 %v61, 4294901760
    %435 = vmatmul.mubr.f32.gmra.mrb[0].mxu0 %v434
    %v436 = vpop.f32.mrb[0].mxu0
    %v437 = vadd.f32 %v251, %v436
    %v438 = vpop.f32.mrb[0].mxu0
    %439 = vmatprep.mubr.f32.mxu0 0.0
    %v440 = vand.u32 %v64, 4294901760
    %441 = vmatmul.mubr.f32.gmra.mrb[0].mxu0 %v440
    %v442 = vpop.f32.mrb[0].mxu0
    %v443 = vadd.f32 %v261, %v442
    %v444 = vpop.f32.mrb[0].mxu0
    %445 = vmatprep.mubr.f32.mxu0 0.0
    %v446 = vand.u32 %v67, 4294901760
    %447 = vmatmul.mubr.f32.gmra.mrb[0].mxu0 %v446
    %v448 = vpop.f32.mrb[0].mxu0
    %v449 = vadd.f32 %v271, %v448
    %v450 = vpop.f32.mrb[0].mxu0
    %451 = vmatprep.mubr.f32.mxu0 0.0
    %v452 = vand.u32 %v70, 4294901760
    %453 = vmatmul.mubr.f32.gmra.mrb[0].mxu0 %v452
    %v454 = vpop.f32.mrb[0].mxu0
    %v455 = vadd.f32 %v281, %v454
    %v456 = vpop.f32.mrb[0].mxu0
    %457 = vmatprep.mubr.f32.mxu0 0.0
    %v458 = vand.u32 %v73, 4294901760
    %459 = vmatmul.mubr.f32.gmra.mrb[0].mxu0 %v458
    %v460 = vpop.f32.mrb[0].mxu0
    %v461 = vadd.f32 %v291, %v460
    %v462 = vpop.f32.mrb[0].mxu0
    %463 = vmatprep.mubr.f32.mxu0 0.0
    %v464 = vand.u32 %v76, 4294901760
    %465 = vmatmul.mubr.f32.gmra.mrb[0].mxu0 %v464
    %v466 = vpop.f32.mrb[0].mxu0
    %v467 = vadd.f32 %v301, %v466
    %v468 = vpop.f32.mrb[0].mxu0
    %469 = vdwg.mxu0
    %470 = vmatprep.subr.mxu0 0.0
    %v471 = vand.u32 %v28, 4294901760
    %v472 = vsub.f32 %v28, %v471
    %473 = vmatpush1.msra.mxu0 %v472
    %474 = vmatprep.subr.mxu0 0.0
    %475 = vmatpush1.msra.mxu0 0.0
    %476 = vmatprep.subr.mxu0 0.0
    %477 = vmatpush1.msra.mxu0 0.0
    %478 = vmatprep.subr.mxu0 0.0
    %479 = vmatpush1.msra.mxu0 0.0
    %480 = vmatprep.subr.mxu0 0.0
    %481 = vmatpush1.msra.mxu0 0.0
    %482 = vmatprep.subr.mxu0 0.0
    %483 = vmatpush1.msra.mxu0 0.0
    %484 = vmatprep.subr.mxu0 0.0
    %485 = vmatpush1.msra.mxu0 0.0
    %486 = vmatprep.subr.mxu0 0.0
    %487 = vmatpush1.msra.mxu0 0.0
    %488 = vmatprep.subr.mxu0 0.0
    %489 = vmatpush1.msra.mxu0 0.0
    %490 = vmatprep.subr.mxu0 0.0
    %491 = vmatpush1.msra.mxu0 0.0
    %492 = vmatprep.subr.mxu0 0.0
    %493 = vmatpush1.msra.mxu0 0.0
    %494 = vmatprep.subr.mxu0 0.0
    %495 = vmatpush1.msra.mxu0 0.0
    %496 = vmatprep.subr.mxu0 0.0
    %497 = vmatpush1.msra.mxu0 0.0
    %498 = vmatprep.subr.mxu0 0.0
    %499 = vmatpush1.msra.mxu0 0.0
    %500 = vmatprep.subr.mxu0 0.0
    %501 = vmatpush1.msra.mxu0 0.0
    %502 = vmatprep.subr.mxu0 0.0
    %503 = vmatpush1.msra.mxu0 0.0
    %504 = vmatprep.subr.mxu0 0.0
    %505 = vmatpush1.msra.mxu0 0.0
    %506 = vmatprep.subr.mxu0 0.0
    %507 = vmatpush1.msra.mxu0 0.0
    %508 = vmatprep.subr.mxu0 0.0
    %509 = vmatpush1.msra.mxu0 0.0
    %510 = vmatprep.subr.mxu0 0.0
    %511 = vmatpush1.msra.mxu0 0.0
    %512 = vmatprep.subr.mxu0 0.0
    %513 = vmatpush1.msra.mxu0 0.0
    %514 = vmatprep.subr.mxu0 0.0
    %515 = vmatpush1.msra.mxu0 0.0
    %516 = vmatprep.subr.mxu0 0.0
    %517 = vmatpush1.msra.mxu0 0.0
    %518 = vmatprep.subr.mxu0 0.0
    %519 = vmatpush1.msra.mxu0 0.0
    %520 = vmatprep.subr.mxu0 0.0
    %521 = vmatpush1.msra.mxu0 0.0
    %522 = vmatprep.subr.mxu0 0.0
    %523 = vmatpush1.msra.mxu0 0.0
    %524 = vmatprep.subr.mxu0 0.0
    %525 = vmatpush1.msra.mxu0 0.0
    %526 = vmatprep.subr.mxu0 0.0
    %527 = vmatpush1.msra.mxu0 0.0
    %528 = vmatprep.subr.mxu0 0.0
    %529 = vmatpush1.msra.mxu0 0.0
    %530 = vmatprep.subr.mxu0 0.0
    %531 = vmatpush1.msra.mxu0 0.0
    %532 = vmatprep.subr.mxu0 0.0
    %533 = vmatpush1.msra.mxu0 0.0
    %534 = vmatprep.subr.mxu0 0.0
    %535 = vmatpush1.msra.mxu0 0.0
    %536 = vmatprep.mubr.f32.mxu0 0.0
    %v537 = vand.u32 %v31, 4294901760
    %v538 = vsub.f32 %v31, %v537
    %539 = vmatmul.mubr.f32.gmra.mrb[0].mxu0 %v538
    %v540 = vpop.f32.mrb[0].mxu0
    %v541 = vadd.f32 %v377, %v540
    %v542 = vpop.f32.mrb[0].mxu0
    %543 = vmatprep.mubr.f32.mxu0 0.0
    %v544 = vand.u32 %v34, 4294901760
    %v545 = vsub.f32 %v34, %v544
    %546 = vmatmul.mubr.f32.gmra.mrb[0].mxu0 %v545
    %v547 = vpop.f32.mrb[0].mxu0
    %v548 = vadd.f32 %v383, %v547
    %v549 = vpop.f32.mrb[0].mxu0
    %550 = vmatprep.mubr.f32.mxu0 0.0
    %v551 = vand.u32 %v37, 4294901760
    %v552 = vsub.f32 %v37, %v551
    %553 = vmatmul.mubr.f32.gmra.mrb[0].mxu0 %v552
    %v554 = vpop.f32.mrb[0].mxu0
    %v555 = vadd.f32 %v389, %v554
    %v556 = vpop.f32.mrb[0].mxu0
    %557 = vmatprep.mubr.f32.mxu0 0.0
    %v558 = vand.u32 %v40, 4294901760
    %v559 = vsub.f32 %v40, %v558
    %560 = vmatmul.mubr.f32.gmra.mrb[0].mxu0 %v559
    %v561 = vpop.f32.mrb[0].mxu0
    %v562 = vadd.f32 %v395, %v561
    %v563 = vpop.f32.mrb[0].mxu0
    %564 = vmatprep.mubr.f32.mxu0 0.0
    %v565 = vand.u32 %v43, 4294901760
    %v566 = vsub.f32 %v43, %v565
    %567 = vmatmul.mubr.f32.gmra.mrb[0].mxu0 %v566
    %v568 = vpop.f32.mrb[0].mxu0
    %v569 = vadd.f32 %v401, %v568
    %v570 = vpop.f32.mrb[0].mxu0
    %571 = vmatprep.mubr.f32.mxu0 0.0
    %v572 = vand.u32 %v46, 4294901760
    %v573 = vsub.f32 %v46, %v572
    %574 = vmatmul.mubr.f32.gmra.mrb[0].mxu0 %v573
    %v575 = vpop.f32.mrb[0].mxu0
    %v576 = vadd.f32 %v407, %v575
    %v577 = vpop.f32.mrb[0].mxu0
    %578 = vmatprep.mubr.f32.mxu0 0.0
    %v579 = vand.u32 %v49, 4294901760
    %v580 = vsub.f32 %v49, %v579
    %581 = vmatmul.mubr.f32.gmra.mrb[0].mxu0 %v580
    %v582 = vpop.f32.mrb[0].mxu0
    %v583 = vadd.f32 %v413, %v582
    %v584 = vpop.f32.mrb[0].mxu0
    %585 = vmatprep.mubr.f32.mxu0 0.0
    %v586 = vand.u32 %v52, 4294901760
    %v587 = vsub.f32 %v52, %v586
    %588 = vmatmul.mubr.f32.gmra.mrb[0].mxu0 %v587
    %v589 = vpop.f32.mrb[0].mxu0
    %v590 = vadd.f32 %v419, %v589
    %v591 = vpop.f32.mrb[0].mxu0
    %592 = vmatprep.mubr.f32.mxu0 0.0
    %v593 = vand.u32 %v55, 4294901760
    %v594 = vsub.f32 %v55, %v593
    %595 = vmatmul.mubr.f32.gmra.mrb[0].mxu0 %v594
    %v596 = vpop.f32.mrb[0].mxu0
    %v597 = vadd.f32 %v425, %v596
    %v598 = vpop.f32.mrb[0].mxu0
    %599 = vmatprep.mubr.f32.mxu0 0.0
    %v600 = vand.u32 %v58, 4294901760
    %v601 = vsub.f32 %v58, %v600
    %602 = vmatmul.mubr.f32.gmra.mrb[0].mxu0 %v601
    %v603 = vpop.f32.mrb[0].mxu0
    %v604 = vadd.f32 %v431, %v603
    %v605 = vpop.f32.mrb[0].mxu0
    %606 = vmatprep.mubr.f32.mxu0 0.0
    %v607 = vand.u32 %v61, 4294901760
    %v608 = vsub.f32 %v61, %v607
    %609 = vmatmul.mubr.f32.gmra.mrb[0].mxu0 %v608
    %v610 = vpop.f32.mrb[0].mxu0
    %v611 = vadd.f32 %v437, %v610
    %v612 = vpop.f32.mrb[0].mxu0
    %613 = vmatprep.mubr.f32.mxu0 0.0
    %v614 = vand.u32 %v64, 4294901760
    %v615 = vsub.f32 %v64, %v614
    %616 = vmatmul.mubr.f32.gmra.mrb[0].mxu0 %v615
    %v617 = vpop.f32.mrb[0].mxu0
    %v618 = vadd.f32 %v443, %v617
    %v619 = vpop.f32.mrb[0].mxu0
    %620 = vmatprep.mubr.f32.mxu0 0.0
    %v621 = vand.u32 %v67, 4294901760
    %v622 = vsub.f32 %v67, %v621
    %623 = vmatmul.mubr.f32.gmra.mrb[0].mxu0 %v622
    %v624 = vpop.f32.mrb[0].mxu0
    %v625 = vadd.f32 %v449, %v624
    %v626 = vpop.f32.mrb[0].mxu0
    %627 = vmatprep.mubr.f32.mxu0 0.0
    %v628 = vand.u32 %v70, 4294901760
    %v629 = vsub.f32 %v70, %v628
    %630 = vmatmul.mubr.f32.gmra.mrb[0].mxu0 %v629
    %v631 = vpop.f32.mrb[0].mxu0
    %v632 = vadd.f32 %v455, %v631
    %v633 = vpop.f32.mrb[0].mxu0
    %634 = vmatprep.mubr.f32.mxu0 0.0
    %v635 = vand.u32 %v73, 4294901760
    %v636 = vsub.f32 %v73, %v635
    %637 = vmatmul.mubr.f32.gmra.mrb[0].mxu0 %v636
    %v638 = vpop.f32.mrb[0].mxu0
    %v639 = vadd.f32 %v461, %v638
    %v640 = vpop.f32.mrb[0].mxu0
    %641 = vmatprep.mubr.f32.mxu0 0.0
    %v642 = vand.u32 %v76, 4294901760
    %v643 = vsub.f32 %v76, %v642
    %644 = vmatmul.mubr.f32.gmra.mrb[0].mxu0 %v643
    %v645 = vpop.f32.mrb[0].mxu0
    %v646 = vadd.f32 %v467, %v645
    %v647 = vpop.f32.mrb[0].mxu0
    %648 = vdwg.mxu0
    %649 = vmatprep.subr.mxu0 0.0
    %v650 = vand.u32 %v28, 4294901760
    %651 = vmatpush1.msra.mxu0 %v650
    %652 = vmatprep.subr.mxu0 0.0
    %653 = vmatpush1.msra.mxu0 0.0
    %654 = vmatprep.subr.mxu0 0.0
    %655 = vmatpush1.msra.mxu0 0.0
    %656 = vmatprep.subr.mxu0 0.0
    %657 = vmatpush1.msra.mxu0 0.0
    %658 = vmatprep.subr.mxu0 0.0
    %659 = vmatpush1.msra.mxu0 0.0
    %660 = vmatprep.subr.mxu0 0.0
    %661 = vmatpush1.msra.mxu0 0.0
    %662 = vmatprep.subr.mxu0 0.0
    %663 = vmatpush1.msra.mxu0 0.0
    %664 = vmatprep.subr.mxu0 0.0
    %665 = vmatpush1.msra.mxu0 0.0
    %666 = vmatprep.subr.mxu0 0.0
    %667 = vmatpush1.msra.mxu0 0.0
    %668 = vmatprep.subr.mxu0 0.0
    %669 = vmatpush1.msra.mxu0 0.0
    %670 = vmatprep.subr.mxu0 0.0
    %671 = vmatpush1.msra.mxu0 0.0
    %672 = vmatprep.subr.mxu0 0.0
    %673 = vmatpush1.msra.mxu0 0.0
    %674 = vmatprep.subr.mxu0 0.0
    %675 = vmatpush1.msra.mxu0 0.0
    %676 = vmatprep.subr.mxu0 0.0
    %677 = vmatpush1.msra.mxu0 0.0
    %678 = vmatprep.subr.mxu0 0.0
    %679 = vmatpush1.msra.mxu0 0.0
    %680 = vmatprep.subr.mxu0 0.0
    %681 = vmatpush1.msra.mxu0 0.0
    %682 = vmatprep.subr.mxu0 0.0
    %683 = vmatpush1.msra.mxu0 0.0
    %684 = vmatprep.subr.mxu0 0.0
    %685 = vmatpush1.msra.mxu0 0.0
    %686 = vmatprep.subr.mxu0 0.0
    %687 = vmatpush1.msra.mxu0 0.0
    %688 = vmatprep.subr.mxu0 0.0
    %689 = vmatpush1.msra.mxu0 0.0
    %690 = vmatprep.subr.mxu0 0.0
    %691 = vmatpush1.msra.mxu0 0.0
    %692 = vmatprep.subr.mxu0 0.0
    %693 = vmatpush1.msra.mxu0 0.0
    %694 = vmatprep.subr.mxu0 0.0
    %695 = vmatpush1.msra.mxu0 0.0
    %696 = vmatprep.subr.mxu0 0.0
    %697 = vmatpush1.msra.mxu0 0.0
    %698 = vmatprep.subr.mxu0 0.0
    %699 = vmatpush1.msra.mxu0 0.0
    %700 = vmatprep.subr.mxu0 0.0
    %701 = vmatpush1.msra.mxu0 0.0
    %702 = vmatprep.subr.mxu0 0.0
    %703 = vmatpush1.msra.mxu0 0.0
    %704 = vmatprep.subr.mxu0 0.0
    %705 = vmatpush1.msra.mxu0 0.0
    %706 = vmatprep.subr.mxu0 0.0
    %707 = vmatpush1.msra.mxu0 0.0
    %708 = vmatprep.subr.mxu0 0.0
    %709 = vmatpush1.msra.mxu0 0.0
    %710 = vmatprep.subr.mxu0 0.0
    %711 = vmatpush1.msra.mxu0 0.0
    %712 = vmatprep.subr.mxu0 0.0
    %713 = vmatpush1.msra.mxu0 0.0
    %714 = vmatprep.mubr.f32.mxu0 0.0
    %v715 = vand.u32 %v31, 4294901760
    %v716 = vsub.f32 %v31, %v715
    %v717 = vand.u32 %v716, 4294901760
    %718 = vmatmul.mubr.f32.gmra.mrb[0].mxu0 %v717
    %v719 = vpop.f32.mrb[0].mxu0
    %v720 = vadd.f32 %v541, %v719
    %v721 = vpop.f32.mrb[0].mxu0
    %722 = vmatprep.mubr.f32.mxu0 0.0
    %v723 = vand.u32 %v34, 4294901760
    %v724 = vsub.f32 %v34, %v723
    %v725 = vand.u32 %v724, 4294901760
    %726 = vmatmul.mubr.f32.gmra.mrb[0].mxu0 %v725
    %v727 = vpop.f32.mrb[0].mxu0
    %v728 = vadd.f32 %v548, %v727
    %v729 = vpop.f32.mrb[0].mxu0
    %730 = vmatprep.mubr.f32.mxu0 0.0
    %v731 = vand.u32 %v37, 4294901760
    %v732 = vsub.f32 %v37, %v731
    %v733 = vand.u32 %v732, 4294901760
    %734 = vmatmul.mubr.f32.gmra.mrb[0].mxu0 %v733
    %v735 = vpop.f32.mrb[0].mxu0
    %v736 = vadd.f32 %v555, %v735
    %v737 = vpop.f32.mrb[0].mxu0
    %738 = vmatprep.mubr.f32.mxu0 0.0
    %v739 = vand.u32 %v40, 4294901760
    %v740 = vsub.f32 %v40, %v739
    %v741 = vand.u32 %v740, 4294901760
    %742 = vmatmul.mubr.f32.gmra.mrb[0].mxu0 %v741
    %v743 = vpop.f32.mrb[0].mxu0
    %v744 = vadd.f32 %v562, %v743
    %v745 = vpop.f32.mrb[0].mxu0
    %746 = vmatprep.mubr.f32.mxu0 0.0
    %v747 = vand.u32 %v43, 4294901760
    %v748 = vsub.f32 %v43, %v747
    %v749 = vand.u32 %v748, 4294901760
    %750 = vmatmul.mubr.f32.gmra.mrb[0].mxu0 %v749
    %v751 = vpop.f32.mrb[0].mxu0
    %v752 = vadd.f32 %v569, %v751
    %v753 = vpop.f32.mrb[0].mxu0
    %754 = vmatprep.mubr.f32.mxu0 0.0
    %v755 = vand.u32 %v46, 4294901760
    %v756 = vsub.f32 %v46, %v755
    %v757 = vand.u32 %v756, 4294901760
    %758 = vmatmul.mubr.f32.gmra.mrb[0].mxu0 %v757
    %v759 = vpop.f32.mrb[0].mxu0
    %v760 = vadd.f32 %v576, %v759
    %v761 = vpop.f32.mrb[0].mxu0
    %762 = vmatprep.mubr.f32.mxu0 0.0
    %v763 = vand.u32 %v49, 4294901760
    %v764 = vsub.f32 %v49, %v763
    %v765 = vand.u32 %v764, 4294901760
    %766 = vmatmul.mubr.f32.gmra.mrb[0].mxu0 %v765
    %v767 = vpop.f32.mrb[0].mxu0
    %v768 = vadd.f32 %v583, %v767
    %v769 = vpop.f32.mrb[0].mxu0
    %770 = vmatprep.mubr.f32.mxu0 0.0
    %v771 = vand.u32 %v52, 4294901760
    %v772 = vsub.f32 %v52, %v771
    %v773 = vand.u32 %v772, 4294901760
    %774 = vmatmul.mubr.f32.gmra.mrb[0].mxu0 %v773
    %v775 = vpop.f32.mrb[0].mxu0
    %v776 = vadd.f32 %v590, %v775
    %v777 = vpop.f32.mrb[0].mxu0
    %778 = vmatprep.mubr.f32.mxu0 0.0
    %v779 = vand.u32 %v55, 4294901760
    %v780 = vsub.f32 %v55, %v779
    %v781 = vand.u32 %v780, 4294901760
    %782 = vmatmul.mubr.f32.gmra.mrb[0].mxu0 %v781
    %v783 = vpop.f32.mrb[0].mxu0
    %v784 = vadd.f32 %v597, %v783
    %v785 = vpop.f32.mrb[0].mxu0
    %786 = vmatprep.mubr.f32.mxu0 0.0
    %v787 = vand.u32 %v58, 4294901760
    %v788 = vsub.f32 %v58, %v787
    %v789 = vand.u32 %v788, 4294901760
    %790 = vmatmul.mubr.f32.gmra.mrb[0].mxu0 %v789
    %v791 = vpop.f32.mrb[0].mxu0
    %v792 = vadd.f32 %v604, %v791
    %v793 = vpop.f32.mrb[0].mxu0
    %794 = vmatprep.mubr.f32.mxu0 0.0
    %v795 = vand.u32 %v61, 4294901760
    %v796 = vsub.f32 %v61, %v795
    %v797 = vand.u32 %v796, 4294901760
    %798 = vmatmul.mubr.f32.gmra.mrb[0].mxu0 %v797
    %v799 = vpop.f32.mrb[0].mxu0
    %v800 = vadd.f32 %v611, %v799
    %v801 = vpop.f32.mrb[0].mxu0
    %802 = vmatprep.mubr.f32.mxu0 0.0
    %v803 = vand.u32 %v64, 4294901760
    %v804 = vsub.f32 %v64, %v803
    %v805 = vand.u32 %v804, 4294901760
    %806 = vmatmul.mubr.f32.gmra.mrb[0].mxu0 %v805
    %v807 = vpop.f32.mrb[0].mxu0
    %v808 = vadd.f32 %v618, %v807
    %v809 = vpop.f32.mrb[0].mxu0
    %810 = vmatprep.mubr.f32.mxu0 0.0
    %v811 = vand.u32 %v67, 4294901760
    %v812 = vsub.f32 %v67, %v811
    %v813 = vand.u32 %v812, 4294901760
    %814 = vmatmul.mubr.f32.gmra.mrb[0].mxu0 %v813
    %v815 = vpop.f32.mrb[0].mxu0
    %v816 = vadd.f32 %v625, %v815
    %v817 = vpop.f32.mrb[0].mxu0
    %818 = vmatprep.mubr.f32.mxu0 0.0
    %v819 = vand.u32 %v70, 4294901760
    %v820 = vsub.f32 %v70, %v819
    %v821 = vand.u32 %v820, 4294901760
    %822 = vmatmul.mubr.f32.gmra.mrb[0].mxu0 %v821
    %v823 = vpop.f32.mrb[0].mxu0
    %v824 = vadd.f32 %v632, %v823
    %v825 = vpop.f32.mrb[0].mxu0
    %826 = vmatprep.mubr.f32.mxu0 0.0
    %v827 = vand.u32 %v73, 4294901760
    %v828 = vsub.f32 %v73, %v827
    %v829 = vand.u32 %v828, 4294901760
    %830 = vmatmul.mubr.f32.gmra.mrb[0].mxu0 %v829
    %v831 = vpop.f32.mrb[0].mxu0
    %v832 = vadd.f32 %v639, %v831
    %v833 = vpop.f32.mrb[0].mxu0
    %834 = vmatprep.mubr.f32.mxu0 0.0
    %v835 = vand.u32 %v76, 4294901760
    %v836 = vsub.f32 %v76, %v835
    %v837 = vand.u32 %v836, 4294901760
    %838 = vmatmul.mubr.f32.gmra.mrb[0].mxu0 %v837
    %v839 = vpop.f32.mrb[0].mxu0
    %v840 = vadd.f32 %v646, %v839
    %v841 = vpop.f32.mrb[0].mxu0
    %842 = vdwg.mxu0
    %843 = vmatprep.subr.mxu0 0.0
    %v844 = vand.u32 %v28, 4294901760
    %v845 = vsub.f32 %v28, %v844
    %v846 = vand.u32 %v845, 4294901760
    %847 = vmatpush1.msra.mxu0 %v846
    %848 = vmatprep.subr.mxu0 0.0
    %849 = vmatpush1.msra.mxu0 0.0
    %850 = vmatprep.subr.mxu0 0.0
    %851 = vmatpush1.msra.mxu0 0.0
    %852 = vmatprep.subr.mxu0 0.0
    %853 = vmatpush1.msra.mxu0 0.0
    %854 = vmatprep.subr.mxu0 0.0
    %855 = vmatpush1.msra.mxu0 0.0
    %856 = vmatprep.subr.mxu0 0.0
    %857 = vmatpush1.msra.mxu0 0.0
    %858 = vmatprep.subr.mxu0 0.0
    %859 = vmatpush1.msra.mxu0 0.0
    %860 = vmatprep.subr.mxu0 0.0
    %861 = vmatpush1.msra.mxu0 0.0
    %862 = vmatprep.subr.mxu0 0.0
    %863 = vmatpush1.msra.mxu0 0.0
    %864 = vmatprep.subr.mxu0 0.0
    %865 = vmatpush1.msra.mxu0 0.0
    %866 = vmatprep.subr.mxu0 0.0
    %867 = vmatpush1.msra.mxu0 0.0
    %868 = vmatprep.subr.mxu0 0.0
    %869 = vmatpush1.msra.mxu0 0.0
    %870 = vmatprep.subr.mxu0 0.0
    %871 = vmatpush1.msra.mxu0 0.0
    %872 = vmatprep.subr.mxu0 0.0
    %873 = vmatpush1.msra.mxu0 0.0
    %874 = vmatprep.subr.mxu0 0.0
    %875 = vmatpush1.msra.mxu0 0.0
    %876 = vmatprep.subr.mxu0 0.0
    %877 = vmatpush1.msra.mxu0 0.0
    %878 = vmatprep.subr.mxu0 0.0
    %879 = vmatpush1.msra.mxu0 0.0
    %880 = vmatprep.subr.mxu0 0.0
    %881 = vmatpush1.msra.mxu0 0.0
    %882 = vmatprep.subr.mxu0 0.0
    %883 = vmatpush1.msra.mxu0 0.0
    %884 = vmatprep.subr.mxu0 0.0
    %885 = vmatpush1.msra.mxu0 0.0
    %886 = vmatprep.subr.mxu0 0.0
    %887 = vmatpush1.msra.mxu0 0.0
    %888 = vmatprep.subr.mxu0 0.0
    %889 = vmatpush1.msra.mxu0 0.0
    %890 = vmatprep.subr.mxu0 0.0
    %891 = vmatpush1.msra.mxu0 0.0
    %892 = vmatprep.subr.mxu0 0.0
    %893 = vmatpush1.msra.mxu0 0.0
    %894 = vmatprep.subr.mxu0 0.0
    %895 = vmatpush1.msra.mxu0 0.0
    %896 = vmatprep.subr.mxu0 0.0
    %897 = vmatpush1.msra.mxu0 0.0
    %898 = vmatprep.subr.mxu0 0.0
    %899 = vmatpush1.msra.mxu0 0.0
    %900 = vmatprep.subr.mxu0 0.0
    %901 = vmatpush1.msra.mxu0 0.0
    %902 = vmatprep.subr.mxu0 0.0
    %903 = vmatpush1.msra.mxu0 0.0
    %904 = vmatprep.subr.mxu0 0.0
    %905 = vmatpush1.msra.mxu0 0.0
    %906 = vmatprep.subr.mxu0 0.0
    %907 = vmatpush1.msra.mxu0 0.0
    %908 = vmatprep.subr.mxu0 0.0
    %909 = vmatpush1.msra.mxu0 0.0
    %910 = vmatprep.mubr.f32.mxu0 0.0
    %v911 = vand.u32 %v31, 4294901760
    %912 = vmatmul.mubr.f32.gmra.mrb[0].mxu0 %v911
    %v913 = vpop.f32.mrb[0].mxu0
    %v914 = vadd.f32 %v720, %v913
    %v915 = vpop.f32.mrb[0].mxu0
    %916 = vmatprep.mubr.f32.mxu0 0.0
    %v917 = vand.u32 %v34, 4294901760
    %918 = vmatmul.mubr.f32.gmra.mrb[0].mxu0 %v917
    %v919 = vpop.f32.mrb[0].mxu0
    %v920 = vadd.f32 %v728, %v919
    %v921 = vpop.f32.mrb[0].mxu0
    %922 = vmatprep.mubr.f32.mxu0 0.0
    %v923 = vand.u32 %v37, 4294901760
    %924 = vmatmul.mubr.f32.gmra.mrb[0].mxu0 %v923
    %v925 = vpop.f32.mrb[0].mxu0
    %v926 = vadd.f32 %v736, %v925
    %v927 = vpop.f32.mrb[0].mxu0
    %928 = vmatprep.mubr.f32.mxu0 0.0
    %v929 = vand.u32 %v40, 4294901760
    %930 = vmatmul.mubr.f32.gmra.mrb[0].mxu0 %v929
    %v931 = vpop.f32.mrb[0].mxu0
    %v932 = vadd.f32 %v744, %v931
    %v933 = vpop.f32.mrb[0].mxu0
    %934 = vmatprep.mubr.f32.mxu0 0.0
    %v935 = vand.u32 %v43, 4294901760
    %936 = vmatmul.mubr.f32.gmra.mrb[0].mxu0 %v935
    %v937 = vpop.f32.mrb[0].mxu0
    %v938 = vadd.f32 %v752, %v937
    %v939 = vpop.f32.mrb[0].mxu0
    %940 = vmatprep.mubr.f32.mxu0 0.0
    %v941 = vand.u32 %v46, 4294901760
    %942 = vmatmul.mubr.f32.gmra.mrb[0].mxu0 %v941
    %v943 = vpop.f32.mrb[0].mxu0
    %v944 = vadd.f32 %v760, %v943
    %v945 = vpop.f32.mrb[0].mxu0
    %946 = vmatprep.mubr.f32.mxu0 0.0
    %v947 = vand.u32 %v49, 4294901760
    %948 = vmatmul.mubr.f32.gmra.mrb[0].mxu0 %v947
    %v949 = vpop.f32.mrb[0].mxu0
    %v950 = vadd.f32 %v768, %v949
    %v951 = vpop.f32.mrb[0].mxu0
    %952 = vmatprep.mubr.f32.mxu0 0.0
    %v953 = vand.u32 %v52, 4294901760
    %954 = vmatmul.mubr.f32.gmra.mrb[0].mxu0 %v953
    %v955 = vpop.f32.mrb[0].mxu0
    %v956 = vadd.f32 %v776, %v955
    %v957 = vpop.f32.mrb[0].mxu0
    %958 = vmatprep.mubr.f32.mxu0 0.0
    %v959 = vand.u32 %v55, 4294901760
    %960 = vmatmul.mubr.f32.gmra.mrb[0].mxu0 %v959
    %v961 = vpop.f32.mrb[0].mxu0
    %v962 = vadd.f32 %v784, %v961
    %v963 = vpop.f32.mrb[0].mxu0
    %964 = vmatprep.mubr.f32.mxu0 0.0
    %v965 = vand.u32 %v58, 4294901760
    %966 = vmatmul.mubr.f32.gmra.mrb[0].mxu0 %v965
    %v967 = vpop.f32.mrb[0].mxu0
    %v968 = vadd.f32 %v792, %v967
    %v969 = vpop.f32.mrb[0].mxu0
    %970 = vmatprep.mubr.f32.mxu0 0.0
    %v971 = vand.u32 %v61, 4294901760
    %972 = vmatmul.mubr.f32.gmra.mrb[0].mxu0 %v971
    %v973 = vpop.f32.mrb[0].mxu0
    %v974 = vadd.f32 %v800, %v973
    %v975 = vpop.f32.mrb[0].mxu0
    %976 = vmatprep.mubr.f32.mxu0 0.0
    %v977 = vand.u32 %v64, 4294901760
    %978 = vmatmul.mubr.f32.gmra.mrb[0].mxu0 %v977
    %v979 = vpop.f32.mrb[0].mxu0
    %v980 = vadd.f32 %v808, %v979
    %v981 = vpop.f32.mrb[0].mxu0
    %982 = vmatprep.mubr.f32.mxu0 0.0
    %v983 = vand.u32 %v67, 4294901760
    %984 = vmatmul.mubr.f32.gmra.mrb[0].mxu0 %v983
    %v985 = vpop.f32.mrb[0].mxu0
    %v986 = vadd.f32 %v816, %v985
    %v987 = vpop.f32.mrb[0].mxu0
    %988 = vmatprep.mubr.f32.mxu0 0.0
    %v989 = vand.u32 %v70, 4294901760
    %990 = vmatmul.mubr.f32.gmra.mrb[0].mxu0 %v989
    %v991 = vpop.f32.mrb[0].mxu0
    %v992 = vadd.f32 %v824, %v991
    %v993 = vpop.f32.mrb[0].mxu0
    %994 = vmatprep.mubr.f32.mxu0 0.0
    %v995 = vand.u32 %v73, 4294901760
    %996 = vmatmul.mubr.f32.gmra.mrb[0].mxu0 %v995
    %v997 = vpop.f32.mrb[0].mxu0
    %v998 = vadd.f32 %v832, %v997
    %v999 = vpop.f32.mrb[0].mxu0
    %1000 = vmatprep.mubr.f32.mxu0 0.0
    %v1001 = vand.u32 %v76, 4294901760
    %1002 = vmatmul.mubr.f32.gmra.mrb[0].mxu0 %v1001
    %v1003 = vpop.f32.mrb[0].mxu0
    %v1004 = vadd.f32 %v840, %v1003
    %v1005 = vpop.f32.mrb[0].mxu0
    %1006 = vdwg.mxu0
    %1007 = vmatprep.subr.mxu0 0.0
    %v1008 = vand.u32 %v28, 4294901760
    %1009 = vmatpush1.msra.mxu0 %v1008
    %1010 = vmatprep.subr.mxu0 0.0
    %1011 = vmatpush1.msra.mxu0 0.0
    %1012 = vmatprep.subr.mxu0 0.0
    %1013 = vmatpush1.msra.mxu0 0.0
    %1014 = vmatprep.subr.mxu0 0.0
    %1015 = vmatpush1.msra.mxu0 0.0
    %1016 = vmatprep.subr.mxu0 0.0
    %1017 = vmatpush1.msra.mxu0 0.0
    %1018 = vmatprep.subr.mxu0 0.0
    %1019 = vmatpush1.msra.mxu0 0.0
    %1020 = vmatprep.subr.mxu0 0.0
    %1021 = vmatpush1.msra.mxu0 0.0
    %1022 = vmatprep.subr.mxu0 0.0
    %1023 = vmatpush1.msra.mxu0 0.0
    %1024 = vmatprep.subr.mxu0 0.0
    %1025 = vmatpush1.msra.mxu0 0.0
    %1026 = vmatprep.subr.mxu0 0.0
    %1027 = vmatpush1.msra.mxu0 0.0
    %1028 = vmatprep.subr.mxu0 0.0
    %1029 = vmatpush1.msra.mxu0 0.0
    %1030 = vmatprep.subr.mxu0 0.0
    %1031 = vmatpush1.msra.mxu0 0.0
    %1032 = vmatprep.subr.mxu0 0.0
    %1033 = vmatpush1.msra.mxu0 0.0
    %1034 = vmatprep.subr.mxu0 0.0
    %1035 = vmatpush1.msra.mxu0 0.0
    %1036 = vmatprep.subr.mxu0 0.0
    %1037 = vmatpush1.msra.mxu0 0.0
    %1038 = vmatprep.subr.mxu0 0.0
    %1039 = vmatpush1.msra.mxu0 0.0
    %1040 = vmatprep.subr.mxu0 0.0
    %1041 = vmatpush1.msra.mxu0 0.0
    %1042 = vmatprep.subr.mxu0 0.0
    %1043 = vmatpush1.msra.mxu0 0.0
    %1044 = vmatprep.subr.mxu0 0.0
    %1045 = vmatpush1.msra.mxu0 0.0
    %1046 = vmatprep.subr.mxu0 0.0
    %1047 = vmatpush1.msra.mxu0 0.0
    %1048 = vmatprep.subr.mxu0 0.0
    %1049 = vmatpush1.msra.mxu0 0.0
    %1050 = vmatprep.subr.mxu0 0.0
    %1051 = vmatpush1.msra.mxu0 0.0
    %1052 = vmatprep.subr.mxu0 0.0
    %1053 = vmatpush1.msra.mxu0 0.0
    %1054 = vmatprep.subr.mxu0 0.0
    %1055 = vmatpush1.msra.mxu0 0.0
    %1056 = vmatprep.subr.mxu0 0.0
    %1057 = vmatpush1.msra.mxu0 0.0
    %1058 = vmatprep.subr.mxu0 0.0
    %1059 = vmatpush1.msra.mxu0 0.0
    %1060 = vmatprep.subr.mxu0 0.0
    %1061 = vmatpush1.msra.mxu0 0.0
    %1062 = vmatprep.subr.mxu0 0.0
    %1063 = vmatpush1.msra.mxu0 0.0
    %1064 = vmatprep.subr.mxu0 0.0
    %1065 = vmatpush1.msra.mxu0 0.0
    %1066 = vmatprep.subr.mxu0 0.0
    %1067 = vmatpush1.msra.mxu0 0.0
    %1068 = vmatprep.subr.mxu0 0.0
    %1069 = vmatpush1.msra.mxu0 0.0
    %1070 = vmatprep.subr.mxu0 0.0
    %1071 = vmatpush1.msra.mxu0 0.0
    %1072 = vmatprep.mubr.f32.mxu0 0.0
    %v1073 = vand.u32 %v31, 4294901760
    %1074 = vmatmul.mubr.f32.gmra.mrb[0].mxu0 %v1073
    %v1075 = vpop.f32.mrb[0].mxu0
    %v1076 = vadd.f32 %v914, %v1075
    %v1077 = vpop.f32.mrb[0].mxu0
    %1078 = vmatprep.mubr.f32.mxu0 0.0
    %v1079 = vand.u32 %v34, 4294901760
    %1080 = vmatmul.mubr.f32.gmra.mrb[0].mxu0 %v1079
    %v1081 = vpop.f32.mrb[0].mxu0
    %v1082 = vadd.f32 %v920, %v1081
    %v1083 = vpop.f32.mrb[0].mxu0
    %1084 = vmatprep.mubr.f32.mxu0 0.0
    %v1085 = vand.u32 %v37, 4294901760
    %1086 = vmatmul.mubr.f32.gmra.mrb[0].mxu0 %v1085
    %v1087 = vpop.f32.mrb[0].mxu0
    %v1088 = vadd.f32 %v926, %v1087
    %v1089 = vpop.f32.mrb[0].mxu0
    %1090 = vmatprep.mubr.f32.mxu0 0.0
    %v1091 = vand.u32 %v40, 4294901760
    %1092 = vmatmul.mubr.f32.gmra.mrb[0].mxu0 %v1091
    %v1093 = vpop.f32.mrb[0].mxu0
    %v1094 = vadd.f32 %v932, %v1093
    %v1095 = vpop.f32.mrb[0].mxu0
    %1096 = vmatprep.mubr.f32.mxu0 0.0
    %v1097 = vand.u32 %v43, 4294901760
    %1098 = vmatmul.mubr.f32.gmra.mrb[0].mxu0 %v1097
    %v1099 = vpop.f32.mrb[0].mxu0
    %v1100 = vadd.f32 %v938, %v1099
    %v1101 = vpop.f32.mrb[0].mxu0
    %1102 = vmatprep.mubr.f32.mxu0 0.0
    %v1103 = vand.u32 %v46, 4294901760
    %1104 = vmatmul.mubr.f32.gmra.mrb[0].mxu0 %v1103
    %v1105 = vpop.f32.mrb[0].mxu0
    %v1106 = vadd.f32 %v944, %v1105
    %v1107 = vpop.f32.mrb[0].mxu0
    %1108 = vmatprep.mubr.f32.mxu0 0.0
    %v1109 = vand.u32 %v49, 4294901760
    %1110 = vmatmul.mubr.f32.gmra.mrb[0].mxu0 %v1109
    %v1111 = vpop.f32.mrb[0].mxu0
    %v1112 = vadd.f32 %v950, %v1111
    %v1113 = vpop.f32.mrb[0].mxu0
    %1114 = vmatprep.mubr.f32.mxu0 0.0
    %v1115 = vand.u32 %v52, 4294901760
    %1116 = vmatmul.mubr.f32.gmra.mrb[0].mxu0 %v1115
    %v1117 = vpop.f32.mrb[0].mxu0
    %v1118 = vadd.f32 %v956, %v1117
    %v1119 = vpop.f32.mrb[0].mxu0
    %1120 = vmatprep.mubr.f32.mxu0 0.0
    %v1121 = vand.u32 %v55, 4294901760
    %1122 = vmatmul.mubr.f32.gmra.mrb[0].mxu0 %v1121
    %v1123 = vpop.f32.mrb[0].mxu0
    %v1124 = vadd.f32 %v962, %v1123
    %v1125 = vpop.f32.mrb[0].mxu0
    %1126 = vmatprep.mubr.f32.mxu0 0.0
    %v1127 = vand.u32 %v58, 4294901760
    %1128 = vmatmul.mubr.f32.gmra.mrb[0].mxu0 %v1127
    %v1129 = vpop.f32.mrb[0].mxu0
    %v1130 = vadd.f32 %v968, %v1129
    %v1131 = vpop.f32.mrb[0].mxu0
    %1132 = vmatprep.mubr.f32.mxu0 0.0
    %v1133 = vand.u32 %v61, 4294901760
    %1134 = vmatmul.mubr.f32.gmra.mrb[0].mxu0 %v1133
    %v1135 = vpop.f32.mrb[0].mxu0
    %v1136 = vadd.f32 %v974, %v1135
    %v1137 = vpop.f32.mrb[0].mxu0
    %1138 = vmatprep.mubr.f32.mxu0 0.0
    %v1139 = vand.u32 %v64, 4294901760
    %1140 = vmatmul.mubr.f32.gmra.mrb[0].mxu0 %v1139
    %v1141 = vpop.f32.mrb[0].mxu0
    %v1142 = vadd.f32 %v980, %v1141
    %v1143 = vpop.f32.mrb[0].mxu0
    %1144 = vmatprep.mubr.f32.mxu0 0.0
    %v1145 = vand.u32 %v67, 4294901760
    %1146 = vmatmul.mubr.f32.gmra.mrb[0].mxu0 %v1145
    %v1147 = vpop.f32.mrb[0].mxu0
    %v1148 = vadd.f32 %v986, %v1147
    %v1149 = vpop.f32.mrb[0].mxu0
    %1150 = vmatprep.mubr.f32.mxu0 0.0
    %v1151 = vand.u32 %v70, 4294901760
    %1152 = vmatmul.mubr.f32.gmra.mrb[0].mxu0 %v1151
    %v1153 = vpop.f32.mrb[0].mxu0
    %v1154 = vadd.f32 %v992, %v1153
    %v1155 = vpop.f32.mrb[0].mxu0
    %1156 = vmatprep.mubr.f32.mxu0 0.0
    %v1157 = vand.u32 %v73, 4294901760
    %1158 = vmatmul.mubr.f32.gmra.mrb[0].mxu0 %v1157
    %v1159 = vpop.f32.mrb[0].mxu0
    %v1160 = vadd.f32 %v998, %v1159
    %v1161 = vpop.f32.mrb[0].mxu0
    %1162 = vmatprep.mubr.f32.mxu0 0.0
    %v1163 = vand.u32 %v76, 4294901760
    %1164 = vmatmul.mubr.f32.gmra.mrb[0].mxu0 %v1163
    %v1165 = vpop.f32.mrb[0].mxu0
    %v1166 = vadd.f32 %v1004, %v1165
    %v1167 = vpop.f32.mrb[0].mxu0
    %1168 = vdwg.mxu0
    %v1169 = vmax.f32 %v1076, 0.0
    %v1170 = vmax.f32 %v1082, 0.0
    %v1171 = vmax.f32 %v1088, 0.0
    %v1172 = vmax.f32 %v1094, 0.0
    %v1173 = vmax.f32 %v1100, 0.0
    %v1174 = vmax.f32 %v1106, 0.0
    %v1175 = vmax.f32 %v1112, 0.0
    %v1176 = vmax.f32 %v1118, 0.0
    %v1177 = vmax.f32 %v1124, 0.0
    %v1178 = vmax.f32 %v1130, 0.0
    %v1179 = vmax.f32 %v1136, 0.0
    %v1180 = vmax.f32 %v1142, 0.0
    %v1181 = vmax.f32 %v1148, 0.0
    %v1182 = vmax.f32 %v1154, 0.0
    %v1183 = vmax.f32 %v1160, 0.0
    %v1184 = vmax.f32 %v1166, 0.0
    %v1185 = vrsqrt.pop %v1169
    %v1186 = vmul.f32 %v1169, %v1185
    %vm1187 = vcmp.eq.f32.partialorder %v1169, inf
    %v1188 = vsel %vm1187, %v1169, %v1186
    %vm1189 = vcmp.eq.f32.partialorder %v1169, 0.0
    %v1190 = vand.u32 %v1169, 2147483648
    %v1191 = vsel %vm1189, %v1190, %v1188
    %v1192 = vrsqrt.pop %v1170
    %v1193 = vmul.f32 %v1170, %v1192
    %vm1194 = vcmp.eq.f32.partialorder %v1170, inf
    %v1195 = vsel %vm1194, %v1170, %v1193
    %vm1196 = vcmp.eq.f32.partialorder %v1170, 0.0
    %v1197 = vand.u32 %v1170, 2147483648
    %v1198 = vsel %vm1196, %v1197, %v1195
    %v1199 = vrsqrt.pop %v1171
    %v1200 = vmul.f32 %v1171, %v1199
    %vm1201 = vcmp.eq.f32.partialorder %v1171, inf
    %v1202 = vsel %vm1201, %v1171, %v1200
    %vm1203 = vcmp.eq.f32.partialorder %v1171, 0.0
    %v1204 = vand.u32 %v1171, 2147483648
    %v1205 = vsel %vm1203, %v1204, %v1202
    %v1206 = vrsqrt.pop %v1172
    %v1207 = vmul.f32 %v1172, %v1206
    %vm1208 = vcmp.eq.f32.partialorder %v1172, inf
    %v1209 = vsel %vm1208, %v1172, %v1207
    %vm1210 = vcmp.eq.f32.partialorder %v1172, 0.0
    %v1211 = vand.u32 %v1172, 2147483648
    %v1212 = vsel %vm1210, %v1211, %v1209
    %v1213 = vrsqrt.pop %v1173
    %v1214 = vmul.f32 %v1173, %v1213
    %vm1215 = vcmp.eq.f32.partialorder %v1173, inf
    %v1216 = vsel %vm1215, %v1173, %v1214
    %vm1217 = vcmp.eq.f32.partialorder %v1173, 0.0
    %v1218 = vand.u32 %v1173, 2147483648
    %v1219 = vsel %vm1217, %v1218, %v1216
    %v1220 = vrsqrt.pop %v1174
    %v1221 = vmul.f32 %v1174, %v1220
    %vm1222 = vcmp.eq.f32.partialorder %v1174, inf
    %v1223 = vsel %vm1222, %v1174, %v1221
    %vm1224 = vcmp.eq.f32.partialorder %v1174, 0.0
    %v1225 = vand.u32 %v1174, 2147483648
    %v1226 = vsel %vm1224, %v1225, %v1223
    %v1227 = vrsqrt.pop %v1175
    %v1228 = vmul.f32 %v1175, %v1227
    %vm1229 = vcmp.eq.f32.partialorder %v1175, inf
    %v1230 = vsel %vm1229, %v1175, %v1228
    %vm1231 = vcmp.eq.f32.partialorder %v1175, 0.0
    %v1232 = vand.u32 %v1175, 2147483648
    %v1233 = vsel %vm1231, %v1232, %v1230
    %v1234 = vrsqrt.pop %v1176
    %v1235 = vmul.f32 %v1176, %v1234
    %vm1236 = vcmp.eq.f32.partialorder %v1176, inf
    %v1237 = vsel %vm1236, %v1176, %v1235
    %vm1238 = vcmp.eq.f32.partialorder %v1176, 0.0
    %v1239 = vand.u32 %v1176, 2147483648
    %v1240 = vsel %vm1238, %v1239, %v1237
    %v1241 = vrsqrt.pop %v1177
    %v1242 = vmul.f32 %v1177, %v1241
    %vm1243 = vcmp.eq.f32.partialorder %v1177, inf
    %v1244 = vsel %vm1243, %v1177, %v1242
    %vm1245 = vcmp.eq.f32.partialorder %v1177, 0.0
    %v1246 = vand.u32 %v1177, 2147483648
    %v1247 = vsel %vm1245, %v1246, %v1244
    %v1248 = vrsqrt.pop %v1178
    %v1249 = vmul.f32 %v1178, %v1248
    %vm1250 = vcmp.eq.f32.partialorder %v1178, inf
    %v1251 = vsel %vm1250, %v1178, %v1249
    %vm1252 = vcmp.eq.f32.partialorder %v1178, 0.0
    %v1253 = vand.u32 %v1178, 2147483648
    %v1254 = vsel %vm1252, %v1253, %v1251
    %v1255 = vrsqrt.pop %v1179
    %v1256 = vmul.f32 %v1179, %v1255
    %vm1257 = vcmp.eq.f32.partialorder %v1179, inf
    %v1258 = vsel %vm1257, %v1179, %v1256
    %vm1259 = vcmp.eq.f32.partialorder %v1179, 0.0
    %v1260 = vand.u32 %v1179, 2147483648
    %v1261 = vsel %vm1259, %v1260, %v1258
    %v1262 = vrsqrt.pop %v1180
    %v1263 = vmul.f32 %v1180, %v1262
    %vm1264 = vcmp.eq.f32.partialorder %v1180, inf
    %v1265 = vsel %vm1264, %v1180, %v1263
    %vm1266 = vcmp.eq.f32.partialorder %v1180, 0.0
    %v1267 = vand.u32 %v1180, 2147483648
    %v1268 = vsel %vm1266, %v1267, %v1265
    %v1269 = vrsqrt.pop %v1181
    %v1270 = vmul.f32 %v1181, %v1269
    %vm1271 = vcmp.eq.f32.partialorder %v1181, inf
    %v1272 = vsel %vm1271, %v1181, %v1270
    %vm1273 = vcmp.eq.f32.partialorder %v1181, 0.0
    %v1274 = vand.u32 %v1181, 2147483648
    %v1275 = vsel %vm1273, %v1274, %v1272
    %v1276 = vrsqrt.pop %v1182
    %v1277 = vmul.f32 %v1182, %v1276
    %vm1278 = vcmp.eq.f32.partialorder %v1182, inf
    %v1279 = vsel %vm1278, %v1182, %v1277
    %vm1280 = vcmp.eq.f32.partialorder %v1182, 0.0
    %v1281 = vand.u32 %v1182, 2147483648
    %v1282 = vsel %vm1280, %v1281, %v1279
    %v1283 = vrsqrt.pop %v1183
    %v1284 = vmul.f32 %v1183, %v1283
    %vm1285 = vcmp.eq.f32.partialorder %v1183, inf
    %v1286 = vsel %vm1285, %v1183, %v1284
    %vm1287 = vcmp.eq.f32.partialorder %v1183, 0.0
    %v1288 = vand.u32 %v1183, 2147483648
    %v1289 = vsel %vm1287, %v1288, %v1286
    %v1290 = vrsqrt.pop %v1184
    %v1291 = vmul.f32 %v1184, %v1290
    %vm1292 = vcmp.eq.f32.partialorder %v1184, inf
    %v1293 = vsel %vm1292, %v1184, %v1291
    %vm1294 = vcmp.eq.f32.partialorder %v1184, 0.0
    %v1295 = vand.u32 %v1184, 2147483648
    %v1296 = vsel %vm1294, %v1295, %v1293
    %1297 = vst [vmem:[#allocation2] sm:$0xff] %v1191
    %1298 = vst [vmem:[#allocation2 + $0x8] sm:$0xff] %v1198
    %1299 = vst [vmem:[#allocation2 + $0x10] sm:$0xff] %v1205
    %1300 = vst [vmem:[#allocation2 + $0x18] sm:$0xff] %v1212
    %1301 = vst [vmem:[#allocation2 + $0x20] sm:$0xff] %v1219
    %1302 = vst [vmem:[#allocation2 + $0x28] sm:$0xff] %v1226
    %1303 = vst [vmem:[#allocation2 + $0x30] sm:$0xff] %v1233
    %1304 = vst [vmem:[#allocation2 + $0x38] sm:$0xff] %v1240
    %1305 = vst [vmem:[#allocation2 + $0x40] sm:$0xff] %v1247
    %1306 = vst [vmem:[#allocation2 + $0x48] sm:$0xff] %v1254
    %1307 = vst [vmem:[#allocation2 + $0x50] sm:$0xff] %v1261
    %1308 = vst [vmem:[#allocation2 + $0x58] sm:$0xff] %v1268
    %1309 = vst [vmem:[#allocation2 + $0x60] sm:$0xff] %v1275
    %1310 = vst [vmem:[#allocation2 + $0x68] sm:$0xff] %v1282
    %1311 = vst [vmem:[#allocation2 + $0x70] sm:$0xff] %v1289
    %1312 = vst [vmem:[#allocation2 + $0x78] sm:$0xff] %v1296
    // Predicated region
    $region10: #{tpu_custom_call.1} parent=1 // pred_check
      _
    $region11: #{tpu_custom_call.1} parent=1 // pred_check_branch
      %1314 = sbr.rel (0) target = $region13
    $region12: #{tpu_custom_call.1} parent=1 // pred_region
      %s1316 = ssub.s32 2048, 2048
      %1317 = vsyncadd [#allocation3], %s1316
      %s1318 = sshll.u32 [#allocation2], 4
      %s1319 = int_to_ptr.vmem [resolvable:$true] %s1318
      %1324 = dma.vmem_to_hbm [thread:$0]  %s1319, 2048, %s2, [#allocation3], 128, 128, 8
    $region13: #{tpu_custom_call.1} parent=1 // pred_fallthru
      _
    // Predicated region
    $region14: #{tpu_custom_call.1} parent=1 // pred_check
      _
    $region15: #{tpu_custom_call.1} parent=1 // pred_check_branch
      %1326 = sbr.rel (0) target = $region17
    $region16: #{tpu_custom_call.1} parent=1 // pred_region
      %1327 = dma.done [#allocation3], 2048
    $region17: #{tpu_custom_call.1} parent=1 // pred_fallthru
      _
    %1328 = vsyncpa [#allocation3], 1

</llo_original>
